<compile_context>
chip_gen: v7x
topology: tpu7x:2x2x1
jax: 0.10.0
libtpu: 0.0.40
codegen_flags: <defaults>
</compile_context>

<pallas_src>
import jax
import jax.numpy as jnp
from jax import lax
from jax.experimental import pallas as pl
from jax.experimental.pallas import tpu as pltpu

EPS = 1e-5  # PyTorch BatchNorm1d default eps


def _round_up(x, m):
    return ((x + m - 1) // m) * m


# ---------------------------------------------------------------------------
# Kernel: whole MLP head for one batch tile.
# Layout: batch on sublanes, features on lanes; weights are (in, out).
# ---------------------------------------------------------------------------
def _make_mlp_head_kernel(num_chains):
    def kernel(x_ref, w1_ref, w2_ref, w3_ref, w4_ref, b_ref, out_ref):
        f2 = w1_ref.shape[1]   # FEAT // 2
        f = w2_ref.shape[1]    # FEAT
        f4 = w4_ref.shape[1]   # FEAT // 4

        # Packed small params, sliced straight off the ref (views / direct
        # sub-tile loads -- no full (8, FEAT) value materialization per step).
        b1 = b_ref[0:1, :f2]   # folded Linear1+BN1 bias, row vector
        b2 = b_ref[1:2, :f]
        b3 = b_ref[2:3, :f]
        b4 = b_ref[3:4, :f4]   # folded Linear4+BN2 bias
        w5 = b_ref[4:5, :f4]   # final Linear(F/4 -> 1) weight as a row
        b5 = b_ref[5:6, 0:1]   # final bias (1, 1)

        bt = x_ref.shape[0]
        chunk = bt // num_chains

        def run_chain(xc):
            # xc: (chunk, H) bf16; MXU matmuls with f32 accumulation.
            # (If the consumer needs tighter accuracy, keep layer 1 in f32.)
            h = jnp.dot(xc, w1_ref[...], preferred_element_type=jnp.float32) + b1
            h = jnp.maximum(h, 0.0)

            h = jnp.dot(h.astype(jnp.bfloat16), w2_ref[...],
                        preferred_element_type=jnp.float32) + b2
            h = jnp.maximum(h, 0.0)

            h = jnp.dot(h.astype(jnp.bfloat16), w3_ref[...],
                        preferred_element_type=jnp.float32) + b3
            h = jnp.maximum(h, 0.0)

            # Dropout(0.1): identity in inference mode.
            # TODO(synk): training-mode dropout (stochastic mask) intentionally omitted.

            h = jnp.dot(h.astype(jnp.bfloat16), w4_ref[...],
                        preferred_element_type=jnp.float32) + b4
            h = jnp.maximum(h, 0.0)

            # Final Linear(F/4 -> 1): VPU multiply + lane reduce (XLU slot),
            # instead of an N=1 MXU matmul.
            return jnp.sum(h * w5, axis=1, keepdims=True) + b5   # (chunk, 1)

        # Static unroll over independent half-tiles: two independent MXU chains
        # let the scheduler hide MRF drain latency on v5e/v6e.
        for c in range(num_chains):
            o = run_chain(x_ref[c * chunk:(c + 1) * chunk, :])
            out_ref[c * chunk:(c + 1) * chunk, :] = o.astype(out_ref.dtype)

    return kernel


# ---------------------------------------------------------------------------
# Wrapper: batch grid, VMEM-resident (single-buffered) weights.
# ---------------------------------------------------------------------------
def q_downstream_pallas(up_stream, packed_params, *, b_tile=None):
    """up_stream: [B, H] float32 pooled [CLS] features. Returns [B] float32."""
    B, H = up_stream.shape
    w1, w2, w3, w4, bias_pack = packed_params   # (H,f2) (f2,f) (f,f) (f,f4) (8,f)
    f2, f, f4 = w1.shape[1], w2.shape[1], w4.shape[1]

    # ---- Batch tiling policy (perf review) -------------------------------
    if b_tile is None:
        if B <= 256:
            # Tiny batch: one full-extent block, pad only to a sublane multiple.
            b_tile = max(8, _round_up(B, 8))
        else:
            # Multiple of 256 fills the v6e/v7x MXU; keep >= 2 tiles so v7x
            # megacore (dimension_semantics="parallel") has work for both TCs.
            b_tile = 512 if _round_up(B, 256) >= 1024 else 256
    num_tiles = pl.cdiv(B, b_tile)
    Bp = num_tiles * b_tile

    # bf16 activations: halves the only HBM traffic that scales with batch.
    x = up_stream.astype(jnp.bfloat16)
    if Bp != B:
        # Padded rows produce garbage that is sliced away below (no in-kernel
        # reduction over the batch axis, so padding cannot leak).
        x = jnp.pad(x, ((0, Bp - B), (0, 0)))

    # Two interleaved half-tiles only when each half is a sublane multiple.
    num_chains = 2 if (b_tile >= 16 and b_tile % 16 == 0) else 1

    flops = 2 * Bp * (H * f2 + f2 * f + f * f + f * f4 + f4)
    bytes_accessed = (
        Bp * H * 2
        + sum(int(w.size) * 2 for w in (w1, w2, w3, w4))
        + int(bias_pack.size) * 4
        + Bp * 4
    )

    # Explicit VMEM budget: double-buffered activation/output tiles,
    # single-buffered weights, headroom for f32 intermediates.
    est = (2 * b_tile * H * 2
           + sum(int(w.size) * 2 for w in (w1, w2, w3, w4))
           + 2 * int(bias_pack.size) * 4
           + 2 * b_tile * 4
           + 4 * b_tile * f * 4)
    vmem_limit = int(min(max(32 << 20, 2 * est), 100 << 20))

    def build(single_buffer_weights):
        # Constant index_map => block never refetched; Buffered(1) drops the
        # useless second buffer (VMEM headroom, esp. on v7x's 64 MiB VMEM).
        wkw = ({"pipeline_mode": pl.Buffered(1)} if single_buffer_weights else {})
        return pl.pallas_call(
            _make_mlp_head_kernel(num_chains),
            out_shape=jax.ShapeDtypeStruct((Bp, 1), jnp.float32),
            grid=(num_tiles,),
            in_specs=[
                # Activations: tiled over the batch (sublane) dimension.
                pl.BlockSpec((b_tile, H), lambda i: (i, 0)),
                # Weights / packed params: constant block index -> VMEM-resident.
                pl.BlockSpec(w1.shape, lambda i: (0, 0), **wkw),
                pl.BlockSpec(w2.shape, lambda i: (0, 0), **wkw),
                pl.BlockSpec(w3.shape, lambda i: (0, 0), **wkw),
                pl.BlockSpec(w4.shape, lambda i: (0, 0), **wkw),
                pl.BlockSpec(bias_pack.shape, lambda i: (0, 0), **wkw),
            ],
            out_specs=pl.BlockSpec((b_tile, 1), lambda i: (i, 0)),
            compiler_params=pltpu.CompilerParams(
                dimension_semantics=("parallel",),   # megacore on v7x; harmless elsewhere
                vmem_limit_bytes=vmem_limit),
            cost_estimate=pl.CostEstimate(
                flops=flops, transcendentals=0, bytes_accessed=bytes_accessed),
        )

    try:
        out = build(True)(x, w1, w2, w3, w4, bias_pack)
    except Exception:
        # Fallback: default double-buffering if this JAX build rejects
        # pipeline_mode=pl.Buffered(1) on pallas_call BlockSpecs.
        out = build(False)(x, w1, w2, w3, w4, bias_pack)

    return out.reshape(Bp)[:B]


# ---------------------------------------------------------------------------
# Parameter construction (PyTorch layout) + BN-folding / packing for the kernel.
# ---------------------------------------------------------------------------
def init_raw_params(key, hidden, feat):
    """PyTorch-style raw params: Linear W (out, in), b (out,); BN (gamma, beta, mean, var)."""
    f2, f4 = feat // 2, feat // 4
    dims = [(f2, hidden), (feat, f2), (feat, feat), (f4, feat), (1, f4)]
    keys = jax.random.split(key, 24)
    ki = iter(range(24))

    def lin(o, i):
        w = jax.random.normal(keys[next(ki)], (o, i), jnp.float32) * (i ** -0.5)
        b = 0.1 * jax.random.normal(keys[next(ki)], (o,), jnp.float32)
        return w, b

    def bn(d):
        g = 1.0 + 0.1 * jax.random.normal(keys[next(ki)], (d,), jnp.float32)
        be = 0.1 * jax.random.normal(keys[next(ki)], (d,), jnp.float32)
        m = 0.1 * jax.random.normal(keys[next(ki)], (d,), jnp.float32)
        v = 1.0 + 0.5 * jax.random.uniform(keys[next(ki)], (d,), jnp.float32)
        return g, be, m, v

    w1, b1 = lin(*dims[0]); bn1 = bn(f2)
    w2, b2 = lin(*dims[1])
    w3, b3 = lin(*dims[2])
    w4, b4 = lin(*dims[3]); bn2 = bn(f4)
    w5, b5 = lin(*dims[4])
    return dict(w1=w1, b1=b1, bn1=bn1, w2=w2, b2=b2, w3=w3, b3=b3,
                w4=w4, b4=b4, bn2=bn2, w5=w5, b5=b5)


def fold_and_pack_params(raw, feat, weight_dtype=jnp.bfloat16):
    """Fold BN into adjacent Linears, pre-transpose weights to (in, out) layout,
    cast to bf16, and pack all small params into one (8, FEAT) f32 array."""
    f2, f4 = feat // 2, feat // 4
    g1, be1, m1, v1 = raw["bn1"]
    g2, be2, m2, v2 = raw["bn2"]
    s1 = g1 * lax.rsqrt(v1 + EPS)
    s2 = g2 * lax.rsqrt(v2 + EPS)

    w1f = raw["w1"] * s1[:, None]               # (f2, H)
    b1f = (raw["b1"] - m1) * s1 + be1           # (f2,)
    w4f = raw["w4"] * s2[:, None]               # (f4, feat)
    b4f = (raw["b4"] - m2) * s2 + be2           # (f4,)

    # One (8, feat) f32 array instead of 6 tiny separate inputs (rows:
    # b1f, b2, b3, b4f, w5-row, b5, pad, pad). Rows broadcast over sublanes.
    bias_pack = jnp.zeros((8, feat), jnp.float32)
    bias_pack = bias_pack.at[0, :f2].set(b1f)
    bias_pack = bias_pack.at[1, :].set(raw["b2"])
    bias_pack = bias_pack.at[2, :].set(raw["b3"])
    bias_pack = bias_pack.at[3, :f4].set(b4f)
    bias_pack = bias_pack.at[4, :f4].set(raw["w5"][0])
    bias_pack = bias_pack.at[5, 0].set(raw["b5"][0])

    # Pre-transpose once here so the per-call wrapper never transposes activations.
    return (w1f.T.astype(weight_dtype),          # (H,  f2)
            raw["w2"].T.astype(weight_dtype),    # (f2, f)
            raw["w3"].T.astype(weight_dtype),    # (f,  f)
            w4f.T.astype(weight_dtype),          # (f,  f4)
            bias_pack)


# ---------------------------------------------------------------------------
# Pure-JAX f32 reference with the original (unfolded) module math.
# ---------------------------------------------------------------------------
def reference_jax(x, raw):
    g1, be1, m1, v1 = raw["bn1"]
    g2, be2, m2, v2 = raw["bn2"]
    h = x @ raw["w1"].T + raw["b1"]
    h = (h - m1) / jnp.sqrt(v1 + EPS) * g1 + be1
    h = jnp.maximum(h, 0.0)
    h = jnp.maximum(h @ raw["w2"].T + raw["b2"], 0.0)
    h = jnp.maximum(h @ raw["w3"].T + raw["b3"], 0.0)
    # Dropout: identity in eval mode.
    h = h @ raw["w4"].T + raw["b4"]
    h = (h - m2) / jnp.sqrt(v2 + EPS) * g2 + be2
    h = jnp.maximum(h, 0.0)
    return (h @ raw["w5"].T + raw["b5"]).reshape(x.shape[0])


if __name__ == "__main__":
    # Small shapes consistent with the module: batch=8, bert hidden=64,
    # down_stream_features=128 (scaled-down 768 / 1024).
    B, HIDDEN, FEAT = 8, 64, 128

    key = jax.random.PRNGKey(0)
    k_x, k_p = jax.random.split(key)

    # TODO(synk): pretrained BERT encoder + tokenizer pipeline is an external
    # checkpoint; `up_stream` stands in for bert(...)['last_hidden_state'][:, 0, :].
    up_stream = jax.random.normal(k_x, (B, HIDDEN), jnp.float32)
    raw = init_raw_params(k_p, HIDDEN, FEAT)
    packed = fold_and_pack_params(raw, FEAT)

    out = jax.block_until_ready(q_downstream_pallas(up_stream, packed))
    ref = reference_jax(up_stream, raw)

    assert out.shape == (B,)
    # bf16 weights + bf16 activations into the MXU vs. full-f32 reference
    # -> relaxed tolerance (f32 accumulation keeps error well inside this).
    assert jnp.allclose(out, ref, atol=5e-2, rtol=5e-2), (out, ref)

    print("KERNEL_OK")
</pallas_src>

<mosaic_0001>
module attributes {stable_mosaic.version = 11 : i64} {
  func.func @kernel(%arg0: i32, %arg1: memref<8x64xbf16, #tpu.memory_space<vmem>>, %arg2: memref<64x64xbf16, #tpu.memory_space<vmem>>, %arg3: memref<64x128xbf16, #tpu.memory_space<vmem>>, %arg4: memref<128x128xbf16, #tpu.memory_space<vmem>>, %arg5: memref<128x32xbf16, #tpu.memory_space<vmem>>, %arg6: memref<8x128xf32, #tpu.memory_space<vmem>>, %arg7: memref<8x1xf32, #tpu.memory_space<vmem>>) attributes {dimension_semantics = [#tpu.dimension_semantics<parallel>], iteration_bounds = array<i64: 1>, scalar_prefetch = 0 : i64, scratch_operands = 0 : i64, tpu.core_type = #tpu.core_type<tc>, window_params = [{transform_indices = @transform_0, window_bounds = array<i64: 8, 64>}, {pipeline_mode = #tpu.pipeline_mode<synchronous>, transform_indices = @transform_1, window_bounds = array<i64: 64, 64>}, {pipeline_mode = #tpu.pipeline_mode<synchronous>, transform_indices = @transform_2, window_bounds = array<i64: 64, 128>}, {pipeline_mode = #tpu.pipeline_mode<synchronous>, transform_indices = @transform_3, window_bounds = array<i64: 128, 128>}, {pipeline_mode = #tpu.pipeline_mode<synchronous>, transform_indices = @transform_4, window_bounds = array<i64: 128, 32>}, {pipeline_mode = #tpu.pipeline_mode<synchronous>, transform_indices = @transform_5, window_bounds = array<i64: 8, 128>}, {transform_indices = @transform_6, window_bounds = array<i64: 8, 1>}]} {
    %c0 = arith.constant 0 : index
    %c0_0 = arith.constant 0 : index
    %0 = vector.load %arg6[%c0, %c0_0] : memref<8x128xf32, #tpu.memory_space<vmem>>, vector<1x64xf32>
    %c1 = arith.constant 1 : index
    %c0_1 = arith.constant 0 : index
    %1 = vector.load %arg6[%c1, %c0_1] : memref<8x128xf32, #tpu.memory_space<vmem>>, vector<1x128xf32>
    %c2 = arith.constant 2 : index
    %c0_2 = arith.constant 0 : index
    %2 = vector.load %arg6[%c2, %c0_2] : memref<8x128xf32, #tpu.memory_space<vmem>>, vector<1x128xf32>
    %c3 = arith.constant 3 : index
    %c0_3 = arith.constant 0 : index
    %3 = vector.load %arg6[%c3, %c0_3] : memref<8x128xf32, #tpu.memory_space<vmem>>, vector<1x32xf32>
    %c4 = arith.constant 4 : index
    %c0_4 = arith.constant 0 : index
    %4 = vector.load %arg6[%c4, %c0_4] : memref<8x128xf32, #tpu.memory_space<vmem>>, vector<1x32xf32>
    %c5 = arith.constant 5 : index
    %c0_5 = arith.constant 0 : index
    %5 = vector.load %arg6[%c5, %c0_5] : memref<8x128xf32, #tpu.memory_space<vmem>>, vector<1x1xf32>
    %c0_6 = arith.constant 0 : index
    %c0_7 = arith.constant 0 : index
    %6 = vector.load %arg1[%c0_6, %c0_7] : memref<8x64xbf16, #tpu.memory_space<vmem>>, vector<8x64xbf16>
    %c0_8 = arith.constant 0 : index
    %c0_9 = arith.constant 0 : index
    %7 = vector.load %arg2[%c0_8, %c0_9] : memref<64x64xbf16, #tpu.memory_space<vmem>>, vector<64x64xbf16>
    %cst = arith.constant dense<0.000000e+00> : vector<8x64xf32>
    %8 = tpu.matmul %6, %7, %cst {dimension_numbers = #tpu.dot_dimension_numbers<[1], [0], [0], [1], [0, 0, 1, 1], [], []>} : vector<8x64xbf16>, vector<64x64xbf16>, vector<8x64xf32> -> vector<8x64xf32>
    %9 = vector.broadcast %0 : vector<1x64xf32> to vector<8x64xf32>
    %10 = arith.addf %8, %9 : vector<8x64xf32>
    %cst_10 = arith.constant 0.000000e+00 : f32
    %11 = vector.broadcast %cst_10 : f32 to vector<8x64xf32>
    %12 = arith.maximumf %10, %11 : vector<8x64xf32>
    %13 = arith.truncf %12 : vector<8x64xf32> to vector<8x64xbf16>
    %c0_11 = arith.constant 0 : index
    %c0_12 = arith.constant 0 : index
    %14 = vector.load %arg3[%c0_11, %c0_12] : memref<64x128xbf16, #tpu.memory_space<vmem>>, vector<64x128xbf16>
    %cst_13 = arith.constant dense<0.000000e+00> : vector<8x128xf32>
    %15 = tpu.matmul %13, %14, %cst_13 {dimension_numbers = #tpu.dot_dimension_numbers<[1], [0], [0], [1], [0, 0, 1, 1], [], []>} : vector<8x64xbf16>, vector<64x128xbf16>, vector<8x128xf32> -> vector<8x128xf32>
    %16 = vector.broadcast %1 : vector<1x128xf32> to vector<8x128xf32>
    %17 = arith.addf %15, %16 : vector<8x128xf32>
    %cst_14 = arith.constant 0.000000e+00 : f32
    %18 = vector.broadcast %cst_14 : f32 to vector<8x128xf32>
    %19 = arith.maximumf %17, %18 : vector<8x128xf32>
    %20 = arith.truncf %19 : vector<8x128xf32> to vector<8x128xbf16>
    %c0_15 = arith.constant 0 : index
    %c0_16 = arith.constant 0 : index
    %21 = vector.load %arg4[%c0_15, %c0_16] : memref<128x128xbf16, #tpu.memory_space<vmem>>, vector<128x128xbf16>
    %cst_17 = arith.constant dense<0.000000e+00> : vector<8x128xf32>
    %22 = tpu.matmul %20, %21, %cst_17 {dimension_numbers = #tpu.dot_dimension_numbers<[1], [0], [0], [1], [0, 0, 1, 1], [], []>} : vector<8x128xbf16>, vector<128x128xbf16>, vector<8x128xf32> -> vector<8x128xf32>
    %23 = vector.broadcast %2 : vector<1x128xf32> to vector<8x128xf32>
    %24 = arith.addf %22, %23 : vector<8x128xf32>
    %cst_18 = arith.constant 0.000000e+00 : f32
    %25 = vector.broadcast %cst_18 : f32 to vector<8x128xf32>
    %26 = arith.maximumf %24, %25 : vector<8x128xf32>
    %27 = arith.truncf %26 : vector<8x128xf32> to vector<8x128xbf16>
    %c0_19 = arith.constant 0 : index
    %c0_20 = arith.constant 0 : index
    %28 = vector.load %arg5[%c0_19, %c0_20] : memref<128x32xbf16, #tpu.memory_space<vmem>>, vector<128x32xbf16>
    %cst_21 = arith.constant dense<0.000000e+00> : vector<8x32xf32>
    %29 = tpu.matmul %27, %28, %cst_21 {dimension_numbers = #tpu.dot_dimension_numbers<[1], [0], [0], [1], [0, 0, 1, 1], [], []>} : vector<8x128xbf16>, vector<128x32xbf16>, vector<8x32xf32> -> vector<8x32xf32>
    %30 = vector.broadcast %3 : vector<1x32xf32> to vector<8x32xf32>
    %31 = arith.addf %29, %30 : vector<8x32xf32>
    %cst_22 = arith.constant 0.000000e+00 : f32
    %32 = vector.broadcast %cst_22 : f32 to vector<8x32xf32>
    %33 = arith.maximumf %31, %32 : vector<8x32xf32>
    %34 = vector.broadcast %4 : vector<1x32xf32> to vector<8x32xf32>
    %35 = arith.mulf %33, %34 : vector<8x32xf32>
    %cst_23 = arith.constant dense<0.000000e+00> : vector<8xf32>
    %36 = vector.multi_reduction <add>, %35, %cst_23 [1] : vector<8x32xf32> to vector<8xf32>
    %37 = vector.shape_cast %36 : vector<8xf32> to vector<8x1xf32>
    %38 = vector.broadcast %5 : vector<1x1xf32> to vector<8x1xf32>
    %39 = arith.addf %37, %38 : vector<8x1xf32>
    %c0_24 = arith.constant 0 : index
    %c0_25 = arith.constant 0 : index
    %40 = vector.load %arg7[%c0_24, %c0_25] : memref<8x1xf32, #tpu.memory_space<vmem>>, vector<8x1xf32>
    tpu.vector_store %arg7[%c0_24, %c0_25], %39 {strides = array<i32>} : memref<8x1xf32, #tpu.memory_space<vmem>>, vector<8x1xf32>,
    return
  }
  func.func @transform_0(%arg0: i32) -> (i32, i32) {
    %c0_i32 = arith.constant 0 : i32
    %c0_i32_0 = arith.constant 0 : i32
    return %arg0, %c0_i32 : i32, i32
  }
  func.func @transform_1(%arg0: i32) -> (i32, i32) {
    %c0_i32 = arith.constant 0 : i32
    %c0_i32_0 = arith.constant 0 : i32
    %c0_i32_1 = arith.constant 0 : i32
    return %c0_i32, %c0_i32_0 : i32, i32
  }
  func.func @transform_2(%arg0: i32) -> (i32, i32) {
    %c0_i32 = arith.constant 0 : i32
    %c0_i32_0 = arith.constant 0 : i32
    %c0_i32_1 = arith.constant 0 : i32
    return %c0_i32, %c0_i32_0 : i32, i32
  }
  func.func @transform_3(%arg0: i32) -> (i32, i32) {
    %c0_i32 = arith.constant 0 : i32
    %c0_i32_0 = arith.constant 0 : i32
    %c0_i32_1 = arith.constant 0 : i32
    return %c0_i32, %c0_i32_0 : i32, i32
  }
  func.func @transform_4(%arg0: i32) -> (i32, i32) {
    %c0_i32 = arith.constant 0 : i32
    %c0_i32_0 = arith.constant 0 : i32
    %c0_i32_1 = arith.constant 0 : i32
    return %c0_i32, %c0_i32_0 : i32, i32
  }
  func.func @transform_5(%arg0: i32) -> (i32, i32) {
    %c0_i32 = arith.constant 0 : i32
    %c0_i32_0 = arith.constant 0 : i32
    %c0_i32_1 = arith.constant 0 : i32
    return %c0_i32, %c0_i32_0 : i32, i32
  }
  func.func @transform_6(%arg0: i32) -> (i32, i32) {
    %c0_i32 = arith.constant 0 : i32
    %c0_i32_0 = arith.constant 0 : i32
    return %arg0, %c0_i32 : i32, i32
  }
}

module attributes {stable_mosaic.version = 11 : i64} {
  func.func @kernel(%arg0: i32, %arg1: memref<8x64xbf16, #tpu.memory_space<vmem>>, %arg2: memref<64x64xbf16, #tpu.memory_space<vmem>>, %arg3: memref<64x128xbf16, #tpu.memory_space<vmem>>, %arg4: memref<128x128xbf16, #tpu.memory_space<vmem>>, %arg5: memref<128x32xbf16, #tpu.memory_space<vmem>>, %arg6: memref<8x128xf32, #tpu.memory_space<vmem>>, %arg7: memref<8x1xf32, #tpu.memory_space<vmem>>) attributes {dimension_semantics = [#tpu.dimension_semantics<parallel>], iteration_bounds = array<i64: 1>, scalar_prefetch = 0 : i64, scratch_operands = 0 : i64, tpu.core_type = #tpu.core_type<tc>, window_params = [{transform_indices = @transform_0, window_bounds = array<i64: 8, 64>}, {pipeline_mode = #tpu.pipeline_mode<synchronous>, transform_indices = @transform_1, window_bounds = array<i64: 64, 64>}, {pipeline_mode = #tpu.pipeline_mode<synchronous>, transform_indices = @transform_2, window_bounds = array<i64: 64, 128>}, {pipeline_mode = #tpu.pipeline_mode<synchronous>, transform_indices = @transform_3, window_bounds = array<i64: 128, 128>}, {pipeline_mode = #tpu.pipeline_mode<synchronous>, transform_indices = @transform_4, window_bounds = array<i64: 128, 32>}, {pipeline_mode = #tpu.pipeline_mode<synchronous>, transform_indices = @transform_5, window_bounds = array<i64: 8, 128>}, {transform_indices = @transform_6, window_bounds = array<i64: 8, 1>}]} {
    %c0 = arith.constant 0 : index
    %c0_0 = arith.constant 0 : index
    %0 = vector.load %arg6[%c0, %c0_0] : memref<8x128xf32, #tpu.memory_space<vmem>>, vector<1x64xf32>
    %c1 = arith.constant 1 : index
    %c0_1 = arith.constant 0 : index
    %1 = vector.load %arg6[%c1, %c0_1] : memref<8x128xf32, #tpu.memory_space<vmem>>, vector<1x128xf32>
    %c2 = arith.constant 2 : index
    %c0_2 = arith.constant 0 : index
    %2 = vector.load %arg6[%c2, %c0_2] : memref<8x128xf32, #tpu.memory_space<vmem>>, vector<1x128xf32>
    %c3 = arith.constant 3 : index
    %c0_3 = arith.constant 0 : index
    %3 = vector.load %arg6[%c3, %c0_3] : memref<8x128xf32, #tpu.memory_space<vmem>>, vector<1x32xf32>
    %c4 = arith.constant 4 : index
    %c0_4 = arith.constant 0 : index
    %4 = vector.load %arg6[%c4, %c0_4] : memref<8x128xf32, #tpu.memory_space<vmem>>, vector<1x32xf32>
    %c5 = arith.constant 5 : index
    %c0_5 = arith.constant 0 : index
    %5 = vector.load %arg6[%c5, %c0_5] : memref<8x128xf32, #tpu.memory_space<vmem>>, vector<1x1xf32>
    %c0_6 = arith.constant 0 : index
    %c0_7 = arith.constant 0 : index
    %6 = vector.load %arg1[%c0_6, %c0_7] : memref<8x64xbf16, #tpu.memory_space<vmem>>, vector<8x64xbf16>
    %c0_8 = arith.constant 0 : index
    %c0_9 = arith.constant 0 : index
    %7 = vector.load %arg2[%c0_8, %c0_9] : memref<64x64xbf16, #tpu.memory_space<vmem>>, vector<64x64xbf16>
    %cst = arith.constant dense<0.000000e+00> : vector<8x64xf32>
    %8 = tpu.matmul %6, %7, %cst {dimension_numbers = #tpu.dot_dimension_numbers<[1], [0], [0], [1], [0, 0, 1, 1], [], []>} : vector<8x64xbf16>, vector<64x64xbf16>, vector<8x64xf32> -> vector<8x64xf32>
    %9 = vector.broadcast %0 : vector<1x64xf32> to vector<8x64xf32>
    %10 = arith.addf %8, %9 : vector<8x64xf32>
    %cst_10 = arith.constant 0.000000e+00 : f32
    %11 = vector.broadcast %cst_10 : f32 to vector<8x64xf32>
    %12 = arith.maximumf %10, %11 : vector<8x64xf32>
    %13 = arith.truncf %12 : vector<8x64xf32> to vector<8x64xbf16>
    %c0_11 = arith.constant 0 : index
    %c0_12 = arith.constant 0 : index
    %14 = vector.load %arg3[%c0_11, %c0_12] : memref<64x128xbf16, #tpu.memory_space<vmem>>, vector<64x128xbf16>
    %cst_13 = arith.constant dense<0.000000e+00> : vector<8x128xf32>
    %15 = tpu.matmul %13, %14, %cst_13 {dimension_numbers = #tpu.dot_dimension_numbers<[1], [0], [0], [1], [0, 0, 1, 1], [], []>} : vector<8x64xbf16>, vector<64x128xbf16>, vector<8x128xf32> -> vector<8x128xf32>
    %16 = vector.broadcast %1 : vector<1x128xf32> to vector<8x128xf32>
    %17 = arith.addf %15, %16 : vector<8x128xf32>
    %cst_14 = arith.constant 0.000000e+00 : f32
    %18 = vector.broadcast %cst_14 : f32 to vector<8x128xf32>
    %19 = arith.maximumf %17, %18 : vector<8x128xf32>
    %20 = arith.truncf %19 : vector<8x128xf32> to vector<8x128xbf16>
    %c0_15 = arith.constant 0 : index
    %c0_16 = arith.constant 0 : index
    %21 = vector.load %arg4[%c0_15, %c0_16] : memref<128x128xbf16, #tpu.memory_space<vmem>>, vector<128x128xbf16>
    %cst_17 = arith.constant dense<0.000000e+00> : vector<8x128xf32>
    %22 = tpu.matmul %20, %21, %cst_17 {dimension_numbers = #tpu.dot_dimension_numbers<[1], [0], [0], [1], [0, 0, 1, 1], [], []>} : vector<8x128xbf16>, vector<128x128xbf16>, vector<8x128xf32> -> vector<8x128xf32>
    %23 = vector.broadcast %2 : vector<1x128xf32> to vector<8x128xf32>
    %24 = arith.addf %22, %23 : vector<8x128xf32>
    %cst_18 = arith.constant 0.000000e+00 : f32
    %25 = vector.broadcast %cst_18 : f32 to vector<8x128xf32>
    %26 = arith.maximumf %24, %25 : vector<8x128xf32>
    %27 = arith.truncf %26 : vector<8x128xf32> to vector<8x128xbf16>
    %c0_19 = arith.constant 0 : index
    %c0_20 = arith.constant 0 : index
    %28 = vector.load %arg5[%c0_19, %c0_20] : memref<128x32xbf16, #tpu.memory_space<vmem>>, vector<128x32xbf16>
    %cst_21 = arith.constant dense<0.000000e+00> : vector<8x32xf32>
    %29 = tpu.matmul %27, %28, %cst_21 {dimension_numbers = #tpu.dot_dimension_numbers<[1], [0], [0], [1], [0, 0, 1, 1], [], []>} : vector<8x128xbf16>, vector<128x32xbf16>, vector<8x32xf32> -> vector<8x32xf32>
    %30 = vector.broadcast %3 : vector<1x32xf32> to vector<8x32xf32>
    %31 = arith.addf %29, %30 : vector<8x32xf32>
    %cst_22 = arith.constant 0.000000e+00 : f32
    %32 = vector.broadcast %cst_22 : f32 to vector<8x32xf32>
    %33 = arith.maximumf %31, %32 : vector<8x32xf32>
    %34 = vector.broadcast %4 : vector<1x32xf32> to vector<8x32xf32>
    %35 = arith.mulf %33, %34 : vector<8x32xf32>
    %cst_23 = arith.constant dense<0.000000e+00> : vector<8xf32>
    %36 = vector.multi_reduction <add>, %35, %cst_23 [1] : vector<8x32xf32> to vector<8xf32>
    %37 = vector.shape_cast %36 : vector<8xf32> to vector<8x1xf32>
    %38 = vector.broadcast %5 : vector<1x1xf32> to vector<8x1xf32>
    %39 = arith.addf %37, %38 : vector<8x1xf32>
    %c0_24 = arith.constant 0 : index
    %c0_25 = arith.constant 0 : index
    %40 = vector.load %arg7[%c0_24, %c0_25] : memref<8x1xf32, #tpu.memory_space<vmem>>, vector<8x1xf32>
    tpu.vector_store %arg7[%c0_24, %c0_25], %39 {strides = array<i32>} : memref<8x1xf32, #tpu.memory_space<vmem>>, vector<8x1xf32>,
    return
  }
  func.func @transform_0(%arg0: i32) -> (i32, i32) {
    %c0_i32 = arith.constant 0 : i32
    %c0_i32_0 = arith.constant 0 : i32
    return %arg0, %c0_i32 : i32, i32
  }
  func.func @transform_1(%arg0: i32) -> (i32, i32) {
    %c0_i32 = arith.constant 0 : i32
    %c0_i32_0 = arith.constant 0 : i32
    %c0_i32_1 = arith.constant 0 : i32
    return %c0_i32, %c0_i32_0 : i32, i32
  }
  func.func @transform_2(%arg0: i32) -> (i32, i32) {
    %c0_i32 = arith.constant 0 : i32
    %c0_i32_0 = arith.constant 0 : i32
    %c0_i32_1 = arith.constant 0 : i32
    return %c0_i32, %c0_i32_0 : i32, i32
  }
  func.func @transform_3(%arg0: i32) -> (i32, i32) {
    %c0_i32 = arith.constant 0 : i32
    %c0_i32_0 = arith.constant 0 : i32
    %c0_i32_1 = arith.constant 0 : i32
    return %c0_i32, %c0_i32_0 : i32, i32
  }
  func.func @transform_4(%arg0: i32) -> (i32, i32) {
    %c0_i32 = arith.constant 0 : i32
    %c0_i32_0 = arith.constant 0 : i32
    %c0_i32_1 = arith.constant 0 : i32
    return %c0_i32, %c0_i32_0 : i32, i32
  }
  func.func @transform_5(%arg0: i32) -> (i32, i32) {
    %c0_i32 = arith.constant 0 : i32
    %c0_i32_0 = arith.constant 0 : i32
    %c0_i32_1 = arith.constant 0 : i32
    return %c0_i32, %c0_i32_0 : i32, i32
  }
  func.func @transform_6(%arg0: i32) -> (i32, i32) {
    %c0_i32 = arith.constant 0 : i32
    %c0_i32_0 = arith.constant 0 : i32
    return %arg0, %c0_i32 : i32, i32
  }
}

</mosaic_0001>

<llo_original>
// kernel: tpu_custom_call.1
$region0: #{tpu_custom_call.1}
  #allocation0 [shape = 'u32[]', space=smem, size = 0x4, offset = 0x4, fixed_abs, tag = 'smem constant byte address 0x4 - core index']
  #allocation1 [shape = 'u32[144,128]{1,0:T(1,128)}', space=vmem, size = 0x12000, scoped, tag = 'internal scratch']
  %s0 = inlined_call_operand.vmem [shape: bf16[8,64], index: 0, kind: input, shape index: {}]
  %s1 = inlined_call_operand.hbm [shape: bf16[64,64], index: 1, kind: input, shape index: {}]
  %s2 = inlined_call_operand.hbm [shape: bf16[64,128], index: 2, kind: input, shape index: {}]
  %s3 = inlined_call_operand.vmem [shape: bf16[128,128], index: 3, kind: input, shape index: {}]
  %s4 = inlined_call_operand.vmem [shape: bf16[128,32], index: 4, kind: input, shape index: {}]
  %s5 = inlined_call_operand.vmem [shape: f32[8,128], index: 5, kind: input, shape index: {}]
  %s6 = inlined_call_operand.vmem [shape: f32[8,1], index: 6, kind: output, shape index: {}]
  %s7 = sld [smem:[#allocation0]]
  $region42: #{tpu_custom_call.1} parent=0
    _
  %s9 = ssub.s32 1, %s7
  %s10 = scalar_select 0, %s9, %s7
  $region1: #{tpu_custom_call.1} parent=0
    #allocation2 [shape = 'u8[16384]{0}', space=vmem, size = 0x4000, scoped, tag = 'input window, operand 1, single buffered']
    #allocation3 [shape = 's32[1]{0}', space=sflag, size = 0x4, scoped, tag = 'scoped memory for tpu_custom_call.1']
    #allocation4 [shape = 'u8[16384]{0}', space=vmem, size = 0x4000, scoped, tag = 'input window, operand 2, single buffered']
    #allocation5 [shape = 's32[1]{0}', space=sflag, size = 0x4, scoped, tag = 'scoped memory for tpu_custom_call.1']
    %11 = vsyncpa [#allocation3], 0
    %12 = vsyncpa [#allocation5], 0
    // Predicated region
    $region2: #{tpu_custom_call.1} parent=1 // pred_check
      _
    $region3: #{tpu_custom_call.1} parent=1 // pred_check_branch
      %14 = sbr.rel (0) target = $region5
    $region4: #{tpu_custom_call.1} parent=1 // pred_region
      _
    $region5: #{tpu_custom_call.1} parent=1 // pred_fallthru
      _
    // Predicated region
    $region6: #{tpu_custom_call.1} parent=1 // pred_check
      _
    $region7: #{tpu_custom_call.1} parent=1 // pred_check_branch
      %16 = sbr.rel (0) target = $region9
    $region8: #{tpu_custom_call.1} parent=1 // pred_region
      %s18 = ssub.s32 512, 512
      %19 = vsyncadd [#allocation3], %s18
      %s20 = sshll.u32 [#allocation2], 4
      %s21 = int_to_ptr.vmem [resolvable:$true] %s20
      %26 = dma.hbm_to_vmem [thread:$0]  %s1, 512, %s21, [#allocation3], 64, 64, 4
    $region9: #{tpu_custom_call.1} parent=1 // pred_fallthru
      _
    // Predicated region
    $region10: #{tpu_custom_call.1} parent=1 // pred_check
      _
    $region11: #{tpu_custom_call.1} parent=1 // pred_check_branch
      %28 = sbr.rel (0) target = $region13
    $region12: #{tpu_custom_call.1} parent=1 // pred_region
      %s30 = ssub.s32 512, 512
      %31 = vsyncadd [#allocation5], %s30
      %s32 = sshll.u32 [#allocation4], 4
      %s33 = int_to_ptr.vmem [resolvable:$true] %s32
      %38 = dma.hbm_to_vmem [thread:$0]  %s2, 512, %s33, [#allocation5], 64, 64, 4
    $region13: #{tpu_custom_call.1} parent=1 // pred_fallthru
      _
    // Predicated region
    $region14: #{tpu_custom_call.1} parent=1 // pred_check
      _
    $region15: #{tpu_custom_call.1} parent=1 // pred_check_branch
      %40 = sbr.rel (0) target = $region17
    $region16: #{tpu_custom_call.1} parent=1 // pred_region
      _
    $region17: #{tpu_custom_call.1} parent=1 // pred_fallthru
      _
    // Predicated region
    $region18: #{tpu_custom_call.1} parent=1 // pred_check
      _
    $region19: #{tpu_custom_call.1} parent=1 // pred_check_branch
      %42 = sbr.rel (0) target = $region21
    $region20: #{tpu_custom_call.1} parent=1 // pred_region
      _
    $region21: #{tpu_custom_call.1} parent=1 // pred_fallthru
      _
    // Predicated region
    $region22: #{tpu_custom_call.1} parent=1 // pred_check
      _
    $region23: #{tpu_custom_call.1} parent=1 // pred_check_branch
      %44 = sbr.rel (0) target = $region25
    $region24: #{tpu_custom_call.1} parent=1 // pred_region
      _
    $region25: #{tpu_custom_call.1} parent=1 // pred_fallthru
      _
    // Predicated region
    $region26: #{tpu_custom_call.1} parent=1 // pred_check
      _
    $region27: #{tpu_custom_call.1} parent=1 // pred_check_branch
      %46 = sbr.rel (0) target = $region29
    $region28: #{tpu_custom_call.1} parent=1 // pred_region
      %47 = dma.done [#allocation3], 512
    $region29: #{tpu_custom_call.1} parent=1 // pred_fallthru
      _
    // Predicated region
    $region30: #{tpu_custom_call.1} parent=1 // pred_check
      _
    $region31: #{tpu_custom_call.1} parent=1 // pred_check_branch
      %49 = sbr.rel (0) target = $region33
    $region32: #{tpu_custom_call.1} parent=1 // pred_region
      %50 = dma.done [#allocation5], 512
    $region33: #{tpu_custom_call.1} parent=1 // pred_fallthru
      _
    %v52 = vld [vmem:[%s5] sm:$0x1]
    %v53 = vld [vmem:[%s5 + $0x1] sm:$0x1]
    %v54 = vld [vmem:[%s5 + $0x2] sm:$0x1]
    %v55 = vld [vmem:[%s5 + $0x3] sm:$0x1]
    %v56 = vld [vmem:[%s5 + $0x4] sm:$0x1]
    %v57 = vld [vmem:[%s5 + $0x5] sm:$0x1]
    %v58 = vld [vmem:[%s0] sm:$0xf]
    %v59 = vld [vmem:[#allocation2] sm:$0xf]
    %v60 = vld [vmem:[#allocation2 + $0x4] sm:$0xf]
    %v61 = vld [vmem:[#allocation2 + $0x8] sm:$0xf]
    %v62 = vld [vmem:[#allocation2 + $0xc] sm:$0xf]
    %v63 = vld [vmem:[#allocation2 + $0x10] sm:$0xf]
    %v64 = vld [vmem:[#allocation2 + $0x14] sm:$0xf]
    %v65 = vld [vmem:[#allocation2 + $0x18] sm:$0xf]
    %v66 = vld [vmem:[#allocation2 + $0x1c] sm:$0xf]
    %v67 = vlaneseq
    %v68 = vshrl.u32 %v67, 7
    %v69 = vsub.s32 0, %v68
    %v70 = vrot.slane %v52, %v69
    %v79 = vunpack.c.l.b16 %v59
    %v80 = vunpack.c.l.b16 %v60
    %v81 = vunpack.c.l.b16 %v61
    %v82 = vunpack.c.l.b16 %v62
    %v83 = vunpack.c.l.b16 %v63
    %v84 = vunpack.c.l.b16 %v64
    %v85 = vunpack.c.l.b16 %v65
    %v86 = vunpack.c.l.b16 %v66
    %v87 = vpack.c.b16 %v80, %v79
    %v88 = vpack.c.b16 %v82, %v81
    %v89 = vpack.c.b16 %v84, %v83
    %v90 = vpack.c.b16 %v86, %v85
    %vm95 = vcmask 523264
    %v97 = vsel %vm95, %v58, 0
    %99 = vmatprep.subr.bf16.mxu0 0
    %100 = vmatpush1.bf16.msra.mxu0 %v87
    %101 = vmatprep.subr.bf16.mxu0 0
    %102 = vmatpush1.bf16.msra.mxu0 %v88
    %103 = vmatprep.subr.bf16.mxu0 0
    %104 = vmatpush1.bf16.msra.mxu0 %v89
    %105 = vmatprep.subr.bf16.mxu0 0
    %106 = vmatpush1.bf16.msra.mxu0 %v90
    %107 = vmatprep.subr.bf16.mxu0 0
    %108 = vmatpush1.bf16.msra.mxu0 0
    %109 = vmatprep.subr.bf16.mxu0 0
    %110 = vmatpush1.bf16.msra.mxu0 0
    %111 = vmatprep.subr.bf16.mxu0 0
    %112 = vmatpush1.bf16.msra.mxu0 0
    %113 = vmatprep.subr.bf16.mxu0 0
    %114 = vmatpush1.bf16.msra.mxu0 0
    %115 = vmatprep.subr.bf16.mxu0 0
    %116 = vmatpush1.bf16.msra.mxu0 0
    %117 = vmatprep.subr.bf16.mxu0 0
    %118 = vmatpush1.bf16.msra.mxu0 0
    %119 = vmatprep.subr.bf16.mxu0 0
    %120 = vmatpush1.bf16.msra.mxu0 0
    %121 = vmatprep.subr.bf16.mxu0 0
    %122 = vmatpush1.bf16.msra.mxu0 0
    %123 = vmatprep.subr.bf16.mxu0 0
    %124 = vmatpush1.bf16.msra.mxu0 0
    %125 = vmatprep.subr.bf16.mxu0 0
    %126 = vmatpush1.bf16.msra.mxu0 0
    %127 = vmatprep.subr.bf16.mxu0 0
    %128 = vmatpush1.bf16.msra.mxu0 0
    %129 = vmatprep.subr.bf16.mxu0 0
    %130 = vmatpush1.bf16.msra.mxu0 0
    %131 = vmatprep.mubr.bf16.mxu0 0
    %132 = vmatmul.mubr.bf16.gmra.mrb[0].mxu0 %v97
    %v133 = vpop.f32.mrb[0].mxu0
    %v134 = vadd.f32 %v70, %v133
    %v135 = vpop.f32.mrb[0].mxu0
    %v136 = vpop.f32.mrb[0].mxu0
    %v137 = vpop.f32.mrb[0].mxu0
    %138 = vdwg.mxu0
    %v139 = vmax.f32 %v134, 0.0
    %v140 = vpack.c.bf16 %v139, %v139
    %v141 = vld [vmem:[#allocation4] sm:$0xf]
    %v142 = vld [vmem:[#allocation4 + $0x4] sm:$0xf]
    %v143 = vld [vmem:[#allocation4 + $0x8] sm:$0xf]
    %v144 = vld [vmem:[#allocation4 + $0xc] sm:$0xf]
    %v145 = vld [vmem:[#allocation4 + $0x10] sm:$0xf]
    %v146 = vld [vmem:[#allocation4 + $0x14] sm:$0xf]
    %v147 = vld [vmem:[#allocation4 + $0x18] sm:$0xf]
    %v148 = vld [vmem:[#allocation4 + $0x1c] sm:$0xf]
    %v149 = vlaneseq
    %v150 = vshrl.u32 %v149, 7
    %v151 = vsub.s32 0, %v150
    %v152 = vrot.slane %v53, %v151
    %v161 = vunpack.c.l.b16 %v141
    %v162 = vunpack.c.l.b16 %v142
    %v163 = vunpack.c.l.b16 %v143
    %v164 = vunpack.c.l.b16 %v144
    %v165 = vunpack.c.l.b16 %v145
    %v166 = vunpack.c.l.b16 %v146
    %v167 = vunpack.c.l.b16 %v147
    %v168 = vunpack.c.l.b16 %v148
    %v169 = vpack.c.b16 %v162, %v161
    %v170 = vpack.c.b16 %v164, %v163
    %v171 = vpack.c.b16 %v166, %v165
    %v172 = vpack.c.b16 %v168, %v167
    %v178 = vsel %vm95, %v140, 0
    %180 = vmatprep.subr.bf16.mxu0 0
    %181 = vmatpush1.bf16.msra.mxu0 %v169
    %182 = vmatprep.subr.bf16.mxu0 0
    %183 = vmatpush1.bf16.msra.mxu0 %v170
    %184 = vmatprep.subr.bf16.mxu0 0
    %185 = vmatpush1.bf16.msra.mxu0 %v171
    %186 = vmatprep.subr.bf16.mxu0 0
    %187 = vmatpush1.bf16.msra.mxu0 %v172
    %188 = vmatprep.subr.bf16.mxu0 0
    %189 = vmatpush1.bf16.msra.mxu0 0
    %190 = vmatprep.subr.bf16.mxu0 0
    %191 = vmatpush1.bf16.msra.mxu0 0
    %192 = vmatprep.subr.bf16.mxu0 0
    %193 = vmatpush1.bf16.msra.mxu0 0
    %194 = vmatprep.subr.bf16.mxu0 0
    %195 = vmatpush1.bf16.msra.mxu0 0
    %196 = vmatprep.subr.bf16.mxu0 0
    %197 = vmatpush1.bf16.msra.mxu0 0
    %198 = vmatprep.subr.bf16.mxu0 0
    %199 = vmatpush1.bf16.msra.mxu0 0
    %200 = vmatprep.subr.bf16.mxu0 0
    %201 = vmatpush1.bf16.msra.mxu0 0
    %202 = vmatprep.subr.bf16.mxu0 0
    %203 = vmatpush1.bf16.msra.mxu0 0
    %204 = vmatprep.subr.bf16.mxu0 0
    %205 = vmatpush1.bf16.msra.mxu0 0
    %206 = vmatprep.subr.bf16.mxu0 0
    %207 = vmatpush1.bf16.msra.mxu0 0
    %208 = vmatprep.subr.bf16.mxu0 0
    %209 = vmatpush1.bf16.msra.mxu0 0
    %210 = vmatprep.subr.bf16.mxu0 0
    %211 = vmatpush1.bf16.msra.mxu0 0
    %212 = vmatprep.mubr.bf16.mxu0 0
    %213 = vmatmul.mubr.bf16.gmra.mrb[0].mxu0 %v178
    %v214 = vpop.f32.mrb[0].mxu0
    %v215 = vadd.f32 %v152, %v214
    %v216 = vpop.f32.mrb[0].mxu0
    %v217 = vpop.f32.mrb[0].mxu0
    %v218 = vpop.f32.mrb[0].mxu0
    %219 = vdwg.mxu0
    %v220 = vmax.f32 %v215, 0.0
    %v221 = vpack.c.bf16 %v220, %v220
    %v222 = vld [vmem:[%s3] sm:$0xf]
    %v223 = vld [vmem:[%s3 + $0x4] sm:$0xf]
    %v224 = vld [vmem:[%s3 + $0x8] sm:$0xf]
    %v225 = vld [vmem:[%s3 + $0xc] sm:$0xf]
    %v226 = vld [vmem:[%s3 + $0x10] sm:$0xf]
    %v227 = vld [vmem:[%s3 + $0x14] sm:$0xf]
    %v228 = vld [vmem:[%s3 + $0x18] sm:$0xf]
    %v229 = vld [vmem:[%s3 + $0x1c] sm:$0xf]
    %v230 = vld [vmem:[%s3 + $0x20] sm:$0xf]
    %v231 = vld [vmem:[%s3 + $0x24] sm:$0xf]
    %v232 = vld [vmem:[%s3 + $0x28] sm:$0xf]
    %v233 = vld [vmem:[%s3 + $0x2c] sm:$0xf]
    %v234 = vld [vmem:[%s3 + $0x30] sm:$0xf]
    %v235 = vld [vmem:[%s3 + $0x34] sm:$0xf]
    %v236 = vld [vmem:[%s3 + $0x38] sm:$0xf]
    %v237 = vld [vmem:[%s3 + $0x3c] sm:$0xf]
    %v238 = vlaneseq
    %v239 = vshrl.u32 %v238, 7
    %v240 = vsub.s32 0, %v239
    %v241 = vrot.slane %v54, %v240
    %v258 = vunpack.c.l.b16 %v222
    %v259 = vunpack.c.l.b16 %v223
    %v260 = vunpack.c.l.b16 %v224
    %v261 = vunpack.c.l.b16 %v225
    %v262 = vunpack.c.l.b16 %v226
    %v263 = vunpack.c.l.b16 %v227
    %v264 = vunpack.c.l.b16 %v228
    %v265 = vunpack.c.l.b16 %v229
    %v266 = vunpack.c.l.b16 %v230
    %v267 = vunpack.c.l.b16 %v231
    %v268 = vunpack.c.l.b16 %v232
    %v269 = vunpack.c.l.b16 %v233
    %v270 = vunpack.c.l.b16 %v234
    %v271 = vunpack.c.l.b16 %v235
    %v272 = vunpack.c.l.b16 %v236
    %v273 = vunpack.c.l.b16 %v237
    %v274 = vpack.c.b16 %v259, %v258
    %v275 = vpack.c.b16 %v261, %v260
    %v276 = vpack.c.b16 %v263, %v262
    %v277 = vpack.c.b16 %v265, %v264
    %v278 = vpack.c.b16 %v267, %v266
    %v279 = vpack.c.b16 %v269, %v268
    %v280 = vpack.c.b16 %v271, %v270
    %v281 = vpack.c.b16 %v273, %v272
    %290 = vmatprep.subr.bf16.mxu0 0
    %291 = vmatpush1.bf16.msra.mxu0 %v274
    %292 = vmatprep.subr.bf16.mxu0 0
    %293 = vmatpush1.bf16.msra.mxu0 %v275
    %294 = vmatprep.subr.bf16.mxu0 0
    %295 = vmatpush1.bf16.msra.mxu0 %v276
    %296 = vmatprep.subr.bf16.mxu0 0
    %297 = vmatpush1.bf16.msra.mxu0 %v277
    %298 = vmatprep.subr.bf16.mxu0 0
    %299 = vmatpush1.bf16.msra.mxu0 %v278
    %300 = vmatprep.subr.bf16.mxu0 0
    %301 = vmatpush1.bf16.msra.mxu0 %v279
    %302 = vmatprep.subr.bf16.mxu0 0
    %303 = vmatpush1.bf16.msra.mxu0 %v280
    %304 = vmatprep.subr.bf16.mxu0 0
    %305 = vmatpush1.bf16.msra.mxu0 %v281
    %306 = vmatprep.subr.bf16.mxu0 0
    %307 = vmatpush1.bf16.msra.mxu0 0
    %308 = vmatprep.subr.bf16.mxu0 0
    %309 = vmatpush1.bf16.msra.mxu0 0
    %310 = vmatprep.subr.bf16.mxu0 0
    %311 = vmatpush1.bf16.msra.mxu0 0
    %312 = vmatprep.subr.bf16.mxu0 0
    %313 = vmatpush1.bf16.msra.mxu0 0
    %314 = vmatprep.subr.bf16.mxu0 0
    %315 = vmatpush1.bf16.msra.mxu0 0
    %316 = vmatprep.subr.bf16.mxu0 0
    %317 = vmatpush1.bf16.msra.mxu0 0
    %318 = vmatprep.subr.bf16.mxu0 0
    %319 = vmatpush1.bf16.msra.mxu0 0
    %320 = vmatprep.subr.bf16.mxu0 0
    %321 = vmatpush1.bf16.msra.mxu0 0
    %322 = vmatprep.mubr.bf16.mxu0 0
    %323 = vmatmul.mubr.bf16.gmra.mrb[0].mxu0 %v221
    %v324 = vpop.f32.mrb[0].mxu0
    %v325 = vadd.f32 %v241, %v324
    %v326 = vpop.f32.mrb[0].mxu0
    %v327 = vpop.f32.mrb[0].mxu0
    %v328 = vpop.f32.mrb[0].mxu0
    %329 = vdwg.mxu0
    %v330 = vmax.f32 %v325, 0.0
    %v331 = vpack.c.bf16 %v330, %v330
    %v332 = vld [vmem:[%s4] sm:$0xf]
    %v333 = vld [vmem:[%s4 + $0x4] sm:$0xf]
    %v334 = vld [vmem:[%s4 + $0x8] sm:$0xf]
    %v335 = vld [vmem:[%s4 + $0xc] sm:$0xf]
    %v336 = vld [vmem:[%s4 + $0x10] sm:$0xf]
    %v337 = vld [vmem:[%s4 + $0x14] sm:$0xf]
    %v338 = vld [vmem:[%s4 + $0x18] sm:$0xf]
    %v339 = vld [vmem:[%s4 + $0x1c] sm:$0xf]
    %v340 = vld [vmem:[%s4 + $0x20] sm:$0xf]
    %v341 = vld [vmem:[%s4 + $0x24] sm:$0xf]
    %v342 = vld [vmem:[%s4 + $0x28] sm:$0xf]
    %v343 = vld [vmem:[%s4 + $0x2c] sm:$0xf]
    %v344 = vld [vmem:[%s4 + $0x30] sm:$0xf]
    %v345 = vld [vmem:[%s4 + $0x34] sm:$0xf]
    %v346 = vld [vmem:[%s4 + $0x38] sm:$0xf]
    %v347 = vld [vmem:[%s4 + $0x3c] sm:$0xf]
    %v348 = vlaneseq
    %v349 = vshrl.u32 %v348, 7
    %v350 = vsub.s32 0, %v349
    %v351 = vrot.slane %v55, %v350
    %v368 = vunpack.c.l.b16 %v332
    %v369 = vunpack.c.l.b16 %v333
    %v370 = vunpack.c.l.b16 %v334
    %v371 = vunpack.c.l.b16 %v335
    %v372 = vunpack.c.l.b16 %v336
    %v373 = vunpack.c.l.b16 %v337
    %v374 = vunpack.c.l.b16 %v338
    %v375 = vunpack.c.l.b16 %v339
    %v376 = vunpack.c.l.b16 %v340
    %v377 = vunpack.c.l.b16 %v341
    %v378 = vunpack.c.l.b16 %v342
    %v379 = vunpack.c.l.b16 %v343
    %v380 = vunpack.c.l.b16 %v344
    %v381 = vunpack.c.l.b16 %v345
    %v382 = vunpack.c.l.b16 %v346
    %v383 = vunpack.c.l.b16 %v347
    %v384 = vpack.c.b16 %v369, %v368
    %v385 = vpack.c.b16 %v371, %v370
    %v386 = vpack.c.b16 %v373, %v372
    %v387 = vpack.c.b16 %v375, %v374
    %v388 = vpack.c.b16 %v377, %v376
    %v389 = vpack.c.b16 %v379, %v378
    %v390 = vpack.c.b16 %v381, %v380
    %v391 = vpack.c.b16 %v383, %v382
    %400 = vmatprep.subr.bf16.mxu0 0
    %401 = vmatpush1.bf16.msra.mxu0 %v384
    %402 = vmatprep.subr.bf16.mxu0 0
    %403 = vmatpush1.bf16.msra.mxu0 %v385
    %404 = vmatprep.subr.bf16.mxu0 0
    %405 = vmatpush1.bf16.msra.mxu0 %v386
    %406 = vmatprep.subr.bf16.mxu0 0
    %407 = vmatpush1.bf16.msra.mxu0 %v387
    %408 = vmatprep.subr.bf16.mxu0 0
    %409 = vmatpush1.bf16.msra.mxu0 %v388
    %410 = vmatprep.subr.bf16.mxu0 0
    %411 = vmatpush1.bf16.msra.mxu0 %v389
    %412 = vmatprep.subr.bf16.mxu0 0
    %413 = vmatpush1.bf16.msra.mxu0 %v390
    %414 = vmatprep.subr.bf16.mxu0 0
    %415 = vmatpush1.bf16.msra.mxu0 %v391
    %416 = vmatprep.subr.bf16.mxu0 0
    %417 = vmatpush1.bf16.msra.mxu0 0
    %418 = vmatprep.subr.bf16.mxu0 0
    %419 = vmatpush1.bf16.msra.mxu0 0
    %420 = vmatprep.subr.bf16.mxu0 0
    %421 = vmatpush1.bf16.msra.mxu0 0
    %422 = vmatprep.subr.bf16.mxu0 0
    %423 = vmatpush1.bf16.msra.mxu0 0
    %424 = vmatprep.subr.bf16.mxu0 0
    %425 = vmatpush1.bf16.msra.mxu0 0
    %426 = vmatprep.subr.bf16.mxu0 0
    %427 = vmatpush1.bf16.msra.mxu0 0
    %428 = vmatprep.subr.bf16.mxu0 0
    %429 = vmatpush1.bf16.msra.mxu0 0
    %430 = vmatprep.subr.bf16.mxu0 0
    %431 = vmatpush1.bf16.msra.mxu0 0
    %432 = vmatprep.mubr.bf16.mxu0 0
    %433 = vmatmul.mubr.bf16.gmra.mrb[0].mxu0 %v331
    %v434 = vpop.f32.mrb[0].mxu0
    %v435 = vadd.f32 %v351, %v434
    %v436 = vpop.f32.mrb[0].mxu0
    %v437 = vpop.f32.mrb[0].mxu0
    %v438 = vpop.f32.mrb[0].mxu0
    %439 = vdwg.mxu0
    %v440 = vmax.f32 %v435, 0.0
    %v441 = vlaneseq
    %v442 = vshrl.u32 %v441, 7
    %v443 = vsub.s32 0, %v442
    %v444 = vrot.slane %v56, %v443
    %v445 = vmul.f32 %v440, %v444
    %vm446 = vcmask 261120
    %v447 = vsel %vm446, %v445, 0.0
    %448 = vadd.xlane.f32.xlu0 %v447
    %v449 = vpop.xlane.xlu0 %448
    %v450 = vlaneseq
    %v451 = vshrl.u32 %v450, 7
    %v452 = vsub.s32 0, %v451
    %v453 = vrot.slane %v57, %v452
    %v454 = vadd.f32 %v449, %v453
    %vm455 = vcmask 7168
    %456 = vst.msk [vmem:[%s6] sm:$0xff] %vm455, %v454
    // Predicated region
    $region34: #{tpu_custom_call.1} parent=1 // pred_check
      _
    $region35: #{tpu_custom_call.1} parent=1 // pred_check_branch
      %458 = sbr.rel (0) target = $region37
    $region36: #{tpu_custom_call.1} parent=1 // pred_region
      _
    $region37: #{tpu_custom_call.1} parent=1 // pred_fallthru
      _
    // Predicated region
    $region38: #{tpu_custom_call.1} parent=1 // pred_check
      _
    $region39: #{tpu_custom_call.1} parent=1 // pred_check_branch
      %460 = sbr.rel (0) target = $region41
    $region40: #{tpu_custom_call.1} parent=1 // pred_region
      _
    $region41: #{tpu_custom_call.1} parent=1 // pred_fallthru
      _
    %461 = vsyncpa [#allocation3], 1
    %462 = vsyncpa [#allocation5], 1

// kernel: tpu_custom_call.1
$region0: #{tpu_custom_call.1}
  #allocation0 [shape = 'u32[]', space=smem, size = 0x4, offset = 0x4, fixed_abs, tag = 'smem constant byte address 0x4 - core index']
  #allocation1 [shape = 'u32[144,128]{1,0:T(1,128)}', space=vmem, size = 0x12000, scoped, tag = 'internal scratch']
  %s0 = inlined_call_operand.vmem [shape: bf16[8,64], index: 0, kind: input, shape index: {}]
  %s1 = inlined_call_operand.hbm [shape: bf16[64,64], index: 1, kind: input, shape index: {}]
  %s2 = inlined_call_operand.hbm [shape: bf16[64,128], index: 2, kind: input, shape index: {}]
  %s3 = inlined_call_operand.vmem [shape: bf16[128,128], index: 3, kind: input, shape index: {}]
  %s4 = inlined_call_operand.vmem [shape: bf16[128,32], index: 4, kind: input, shape index: {}]
  %s5 = inlined_call_operand.vmem [shape: f32[8,128], index: 5, kind: input, shape index: {}]
  %s6 = inlined_call_operand.vmem [shape: f32[8,1], index: 6, kind: output, shape index: {}]
  %s7 = sld [smem:[#allocation0]]
  $region42: #{tpu_custom_call.1} parent=0
    _
  %s9 = ssub.s32 1, %s7
  %s10 = scalar_select 0, %s9, %s7
  $region1: #{tpu_custom_call.1} parent=0
    #allocation2 [shape = 'u8[16384]{0}', space=vmem, size = 0x4000, scoped, tag = 'input window, operand 1, single buffered']
    #allocation3 [shape = 's32[1]{0}', space=sflag, size = 0x4, scoped, tag = 'scoped memory for tpu_custom_call.1']
    #allocation4 [shape = 'u8[16384]{0}', space=vmem, size = 0x4000, scoped, tag = 'input window, operand 2, single buffered']
    #allocation5 [shape = 's32[1]{0}', space=sflag, size = 0x4, scoped, tag = 'scoped memory for tpu_custom_call.1']
    %11 = vsyncpa [#allocation3], 0
    %12 = vsyncpa [#allocation5], 0
    // Predicated region
    $region2: #{tpu_custom_call.1} parent=1 // pred_check
      _
    $region3: #{tpu_custom_call.1} parent=1 // pred_check_branch
      %14 = sbr.rel (0) target = $region5
    $region4: #{tpu_custom_call.1} parent=1 // pred_region
      _
    $region5: #{tpu_custom_call.1} parent=1 // pred_fallthru
      _
    // Predicated region
    $region6: #{tpu_custom_call.1} parent=1 // pred_check
      _
    $region7: #{tpu_custom_call.1} parent=1 // pred_check_branch
      %16 = sbr.rel (0) target = $region9
    $region8: #{tpu_custom_call.1} parent=1 // pred_region
      %s18 = ssub.s32 512, 512
      %19 = vsyncadd [#allocation3], %s18
      %s20 = sshll.u32 [#allocation2], 4
      %s21 = int_to_ptr.vmem [resolvable:$true] %s20
      %26 = dma.hbm_to_vmem [thread:$0]  %s1, 512, %s21, [#allocation3], 64, 64, 4
    $region9: #{tpu_custom_call.1} parent=1 // pred_fallthru
      _
    // Predicated region
    $region10: #{tpu_custom_call.1} parent=1 // pred_check
      _
    $region11: #{tpu_custom_call.1} parent=1 // pred_check_branch
      %28 = sbr.rel (0) target = $region13
    $region12: #{tpu_custom_call.1} parent=1 // pred_region
      %s30 = ssub.s32 512, 512
      %31 = vsyncadd [#allocation5], %s30
      %s32 = sshll.u32 [#allocation4], 4
      %s33 = int_to_ptr.vmem [resolvable:$true] %s32
      %38 = dma.hbm_to_vmem [thread:$0]  %s2, 512, %s33, [#allocation5], 64, 64, 4
    $region13: #{tpu_custom_call.1} parent=1 // pred_fallthru
      _
    // Predicated region
    $region14: #{tpu_custom_call.1} parent=1 // pred_check
      _
    $region15: #{tpu_custom_call.1} parent=1 // pred_check_branch
      %40 = sbr.rel (0) target = $region17
    $region16: #{tpu_custom_call.1} parent=1 // pred_region
      _
    $region17: #{tpu_custom_call.1} parent=1 // pred_fallthru
      _
    // Predicated region
    $region18: #{tpu_custom_call.1} parent=1 // pred_check
      _
    $region19: #{tpu_custom_call.1} parent=1 // pred_check_branch
      %42 = sbr.rel (0) target = $region21
    $region20: #{tpu_custom_call.1} parent=1 // pred_region
      _
    $region21: #{tpu_custom_call.1} parent=1 // pred_fallthru
      _
    // Predicated region
    $region22: #{tpu_custom_call.1} parent=1 // pred_check
      _
    $region23: #{tpu_custom_call.1} parent=1 // pred_check_branch
      %44 = sbr.rel (0) target = $region25
    $region24: #{tpu_custom_call.1} parent=1 // pred_region
      _
    $region25: #{tpu_custom_call.1} parent=1 // pred_fallthru
      _
    // Predicated region
    $region26: #{tpu_custom_call.1} parent=1 // pred_check
      _
    $region27: #{tpu_custom_call.1} parent=1 // pred_check_branch
      %46 = sbr.rel (0) target = $region29
    $region28: #{tpu_custom_call.1} parent=1 // pred_region
      %47 = dma.done [#allocation3], 512
    $region29: #{tpu_custom_call.1} parent=1 // pred_fallthru
      _
    // Predicated region
    $region30: #{tpu_custom_call.1} parent=1 // pred_check
      _
    $region31: #{tpu_custom_call.1} parent=1 // pred_check_branch
      %49 = sbr.rel (0) target = $region33
    $region32: #{tpu_custom_call.1} parent=1 // pred_region
      %50 = dma.done [#allocation5], 512
    $region33: #{tpu_custom_call.1} parent=1 // pred_fallthru
      _
    %v52 = vld [vmem:[%s5] sm:$0x1]
    %v53 = vld [vmem:[%s5 + $0x1] sm:$0x1]
    %v54 = vld [vmem:[%s5 + $0x2] sm:$0x1]
    %v55 = vld [vmem:[%s5 + $0x3] sm:$0x1]
    %v56 = vld [vmem:[%s5 + $0x4] sm:$0x1]
    %v57 = vld [vmem:[%s5 + $0x5] sm:$0x1]
    %v58 = vld [vmem:[%s0] sm:$0xf]
    %v59 = vld [vmem:[#allocation2] sm:$0xf]
    %v60 = vld [vmem:[#allocation2 + $0x4] sm:$0xf]
    %v61 = vld [vmem:[#allocation2 + $0x8] sm:$0xf]
    %v62 = vld [vmem:[#allocation2 + $0xc] sm:$0xf]
    %v63 = vld [vmem:[#allocation2 + $0x10] sm:$0xf]
    %v64 = vld [vmem:[#allocation2 + $0x14] sm:$0xf]
    %v65 = vld [vmem:[#allocation2 + $0x18] sm:$0xf]
    %v66 = vld [vmem:[#allocation2 + $0x1c] sm:$0xf]
    %v67 = vlaneseq
    %v68 = vshrl.u32 %v67, 7
    %v69 = vsub.s32 0, %v68
    %v70 = vrot.slane %v52, %v69
    %v79 = vunpack.c.l.b16 %v59
    %v80 = vunpack.c.l.b16 %v60
    %v81 = vunpack.c.l.b16 %v61
    %v82 = vunpack.c.l.b16 %v62
    %v83 = vunpack.c.l.b16 %v63
    %v84 = vunpack.c.l.b16 %v64
    %v85 = vunpack.c.l.b16 %v65
    %v86 = vunpack.c.l.b16 %v66
    %v87 = vpack.c.b16 %v80, %v79
    %v88 = vpack.c.b16 %v82, %v81
    %v89 = vpack.c.b16 %v84, %v83
    %v90 = vpack.c.b16 %v86, %v85
    %vm95 = vcmask 523264
    %v97 = vsel %vm95, %v58, 0
    %99 = vmatprep.subr.bf16.mxu0 0
    %100 = vmatpush1.bf16.msra.mxu0 %v87
    %101 = vmatprep.subr.bf16.mxu0 0
    %102 = vmatpush1.bf16.msra.mxu0 %v88
    %103 = vmatprep.subr.bf16.mxu0 0
    %104 = vmatpush1.bf16.msra.mxu0 %v89
    %105 = vmatprep.subr.bf16.mxu0 0
    %106 = vmatpush1.bf16.msra.mxu0 %v90
    %107 = vmatprep.subr.bf16.mxu0 0
    %108 = vmatpush1.bf16.msra.mxu0 0
    %109 = vmatprep.subr.bf16.mxu0 0
    %110 = vmatpush1.bf16.msra.mxu0 0
    %111 = vmatprep.subr.bf16.mxu0 0
    %112 = vmatpush1.bf16.msra.mxu0 0
    %113 = vmatprep.subr.bf16.mxu0 0
    %114 = vmatpush1.bf16.msra.mxu0 0
    %115 = vmatprep.subr.bf16.mxu0 0
    %116 = vmatpush1.bf16.msra.mxu0 0
    %117 = vmatprep.subr.bf16.mxu0 0
    %118 = vmatpush1.bf16.msra.mxu0 0
    %119 = vmatprep.subr.bf16.mxu0 0
    %120 = vmatpush1.bf16.msra.mxu0 0
    %121 = vmatprep.subr.bf16.mxu0 0
    %122 = vmatpush1.bf16.msra.mxu0 0
    %123 = vmatprep.subr.bf16.mxu0 0
    %124 = vmatpush1.bf16.msra.mxu0 0
    %125 = vmatprep.subr.bf16.mxu0 0
    %126 = vmatpush1.bf16.msra.mxu0 0
    %127 = vmatprep.subr.bf16.mxu0 0
    %128 = vmatpush1.bf16.msra.mxu0 0
    %129 = vmatprep.subr.bf16.mxu0 0
    %130 = vmatpush1.bf16.msra.mxu0 0
    %131 = vmatprep.mubr.bf16.mxu0 0
    %132 = vmatmul.mubr.bf16.gmra.mrb[0].mxu0 %v97
    %v133 = vpop.f32.mrb[0].mxu0
    %v134 = vadd.f32 %v70, %v133
    %v135 = vpop.f32.mrb[0].mxu0
    %v136 = vpop.f32.mrb[0].mxu0
    %v137 = vpop.f32.mrb[0].mxu0
    %138 = vdwg.mxu0
    %v139 = vmax.f32 %v134, 0.0
    %v140 = vpack.c.bf16 %v139, %v139
    %v141 = vld [vmem:[#allocation4] sm:$0xf]
    %v142 = vld [vmem:[#allocation4 + $0x4] sm:$0xf]
    %v143 = vld [vmem:[#allocation4 + $0x8] sm:$0xf]
    %v144 = vld [vmem:[#allocation4 + $0xc] sm:$0xf]
    %v145 = vld [vmem:[#allocation4 + $0x10] sm:$0xf]
    %v146 = vld [vmem:[#allocation4 + $0x14] sm:$0xf]
    %v147 = vld [vmem:[#allocation4 + $0x18] sm:$0xf]
    %v148 = vld [vmem:[#allocation4 + $0x1c] sm:$0xf]
    %v149 = vlaneseq
    %v150 = vshrl.u32 %v149, 7
    %v151 = vsub.s32 0, %v150
    %v152 = vrot.slane %v53, %v151
    %v161 = vunpack.c.l.b16 %v141
    %v162 = vunpack.c.l.b16 %v142
    %v163 = vunpack.c.l.b16 %v143
    %v164 = vunpack.c.l.b16 %v144
    %v165 = vunpack.c.l.b16 %v145
    %v166 = vunpack.c.l.b16 %v146
    %v167 = vunpack.c.l.b16 %v147
    %v168 = vunpack.c.l.b16 %v148
    %v169 = vpack.c.b16 %v162, %v161
    %v170 = vpack.c.b16 %v164, %v163
    %v171 = vpack.c.b16 %v166, %v165
    %v172 = vpack.c.b16 %v168, %v167
    %v178 = vsel %vm95, %v140, 0
    %180 = vmatprep.subr.bf16.mxu0 0
    %181 = vmatpush1.bf16.msra.mxu0 %v169
    %182 = vmatprep.subr.bf16.mxu0 0
    %183 = vmatpush1.bf16.msra.mxu0 %v170
    %184 = vmatprep.subr.bf16.mxu0 0
    %185 = vmatpush1.bf16.msra.mxu0 %v171
    %186 = vmatprep.subr.bf16.mxu0 0
    %187 = vmatpush1.bf16.msra.mxu0 %v172
    %188 = vmatprep.subr.bf16.mxu0 0
    %189 = vmatpush1.bf16.msra.mxu0 0
    %190 = vmatprep.subr.bf16.mxu0 0
    %191 = vmatpush1.bf16.msra.mxu0 0
    %192 = vmatprep.subr.bf16.mxu0 0
    %193 = vmatpush1.bf16.msra.mxu0 0
    %194 = vmatprep.subr.bf16.mxu0 0
    %195 = vmatpush1.bf16.msra.mxu0 0
    %196 = vmatprep.subr.bf16.mxu0 0
    %197 = vmatpush1.bf16.msra.mxu0 0
    %198 = vmatprep.subr.bf16.mxu0 0
    %199 = vmatpush1.bf16.msra.mxu0 0
    %200 = vmatprep.subr.bf16.mxu0 0
    %201 = vmatpush1.bf16.msra.mxu0 0
    %202 = vmatprep.subr.bf16.mxu0 0
    %203 = vmatpush1.bf16.msra.mxu0 0
    %204 = vmatprep.subr.bf16.mxu0 0
    %205 = vmatpush1.bf16.msra.mxu0 0
    %206 = vmatprep.subr.bf16.mxu0 0
    %207 = vmatpush1.bf16.msra.mxu0 0
    %208 = vmatprep.subr.bf16.mxu0 0
    %209 = vmatpush1.bf16.msra.mxu0 0
    %210 = vmatprep.subr.bf16.mxu0 0
    %211 = vmatpush1.bf16.msra.mxu0 0
    %212 = vmatprep.mubr.bf16.mxu0 0
    %213 = vmatmul.mubr.bf16.gmra.mrb[0].mxu0 %v178
    %v214 = vpop.f32.mrb[0].mxu0
    %v215 = vadd.f32 %v152, %v214
    %v216 = vpop.f32.mrb[0].mxu0
    %v217 = vpop.f32.mrb[0].mxu0
    %v218 = vpop.f32.mrb[0].mxu0
    %219 = vdwg.mxu0
    %v220 = vmax.f32 %v215, 0.0
    %v221 = vpack.c.bf16 %v220, %v220
    %v222 = vld [vmem:[%s3] sm:$0xf]
    %v223 = vld [vmem:[%s3 + $0x4] sm:$0xf]
    %v224 = vld [vmem:[%s3 + $0x8] sm:$0xf]
    %v225 = vld [vmem:[%s3 + $0xc] sm:$0xf]
    %v226 = vld [vmem:[%s3 + $0x10] sm:$0xf]
    %v227 = vld [vmem:[%s3 + $0x14] sm:$0xf]
    %v228 = vld [vmem:[%s3 + $0x18] sm:$0xf]
    %v229 = vld [vmem:[%s3 + $0x1c] sm:$0xf]
    %v230 = vld [vmem:[%s3 + $0x20] sm:$0xf]
    %v231 = vld [vmem:[%s3 + $0x24] sm:$0xf]
    %v232 = vld [vmem:[%s3 + $0x28] sm:$0xf]
    %v233 = vld [vmem:[%s3 + $0x2c] sm:$0xf]
    %v234 = vld [vmem:[%s3 + $0x30] sm:$0xf]
    %v235 = vld [vmem:[%s3 + $0x34] sm:$0xf]
    %v236 = vld [vmem:[%s3 + $0x38] sm:$0xf]
    %v237 = vld [vmem:[%s3 + $0x3c] sm:$0xf]
    %v238 = vlaneseq
    %v239 = vshrl.u32 %v238, 7
    %v240 = vsub.s32 0, %v239
    %v241 = vrot.slane %v54, %v240
    %v258 = vunpack.c.l.b16 %v222
    %v259 = vunpack.c.l.b16 %v223
    %v260 = vunpack.c.l.b16 %v224
    %v261 = vunpack.c.l.b16 %v225
    %v262 = vunpack.c.l.b16 %v226
    %v263 = vunpack.c.l.b16 %v227
    %v264 = vunpack.c.l.b16 %v228
    %v265 = vunpack.c.l.b16 %v229
    %v266 = vunpack.c.l.b16 %v230
    %v267 = vunpack.c.l.b16 %v231
    %v268 = vunpack.c.l.b16 %v232
    %v269 = vunpack.c.l.b16 %v233
    %v270 = vunpack.c.l.b16 %v234
    %v271 = vunpack.c.l.b16 %v235
    %v272 = vunpack.c.l.b16 %v236
    %v273 = vunpack.c.l.b16 %v237
    %v274 = vpack.c.b16 %v259, %v258
    %v275 = vpack.c.b16 %v261, %v260
    %v276 = vpack.c.b16 %v263, %v262
    %v277 = vpack.c.b16 %v265, %v264
    %v278 = vpack.c.b16 %v267, %v266
    %v279 = vpack.c.b16 %v269, %v268
    %v280 = vpack.c.b16 %v271, %v270
    %v281 = vpack.c.b16 %v273, %v272
    %290 = vmatprep.subr.bf16.mxu0 0
    %291 = vmatpush1.bf16.msra.mxu0 %v274
    %292 = vmatprep.subr.bf16.mxu0 0
    %293 = vmatpush1.bf16.msra.mxu0 %v275
    %294 = vmatprep.subr.bf16.mxu0 0
    %295 = vmatpush1.bf16.msra.mxu0 %v276
    %296 = vmatprep.subr.bf16.mxu0 0
    %297 = vmatpush1.bf16.msra.mxu0 %v277
    %298 = vmatprep.subr.bf16.mxu0 0
    %299 = vmatpush1.bf16.msra.mxu0 %v278
    %300 = vmatprep.subr.bf16.mxu0 0
    %301 = vmatpush1.bf16.msra.mxu0 %v279
    %302 = vmatprep.subr.bf16.mxu0 0
    %303 = vmatpush1.bf16.msra.mxu0 %v280
    %304 = vmatprep.subr.bf16.mxu0 0
    %305 = vmatpush1.bf16.msra.mxu0 %v281
    %306 = vmatprep.subr.bf16.mxu0 0
    %307 = vmatpush1.bf16.msra.mxu0 0
    %308 = vmatprep.subr.bf16.mxu0 0
    %309 = vmatpush1.bf16.msra.mxu0 0
    %310 = vmatprep.subr.bf16.mxu0 0
    %311 = vmatpush1.bf16.msra.mxu0 0
    %312 = vmatprep.subr.bf16.mxu0 0
    %313 = vmatpush1.bf16.msra.mxu0 0
    %314 = vmatprep.subr.bf16.mxu0 0
    %315 = vmatpush1.bf16.msra.mxu0 0
    %316 = vmatprep.subr.bf16.mxu0 0
    %317 = vmatpush1.bf16.msra.mxu0 0
    %318 = vmatprep.subr.bf16.mxu0 0
    %319 = vmatpush1.bf16.msra.mxu0 0
    %320 = vmatprep.subr.bf16.mxu0 0
    %321 = vmatpush1.bf16.msra.mxu0 0
    %322 = vmatprep.mubr.bf16.mxu0 0
    %323 = vmatmul.mubr.bf16.gmra.mrb[0].mxu0 %v221
    %v324 = vpop.f32.mrb[0].mxu0
    %v325 = vadd.f32 %v241, %v324
    %v326 = vpop.f32.mrb[0].mxu0
    %v327 = vpop.f32.mrb[0].mxu0
    %v328 = vpop.f32.mrb[0].mxu0
    %329 = vdwg.mxu0
    %v330 = vmax.f32 %v325, 0.0
    %v331 = vpack.c.bf16 %v330, %v330
    %v332 = vld [vmem:[%s4] sm:$0xf]
    %v333 = vld [vmem:[%s4 + $0x4] sm:$0xf]
    %v334 = vld [vmem:[%s4 + $0x8] sm:$0xf]
    %v335 = vld [vmem:[%s4 + $0xc] sm:$0xf]
    %v336 = vld [vmem:[%s4 + $0x10] sm:$0xf]
    %v337 = vld [vmem:[%s4 + $0x14] sm:$0xf]
    %v338 = vld [vmem:[%s4 + $0x18] sm:$0xf]
    %v339 = vld [vmem:[%s4 + $0x1c] sm:$0xf]
    %v340 = vld [vmem:[%s4 + $0x20] sm:$0xf]
    %v341 = vld [vmem:[%s4 + $0x24] sm:$0xf]
    %v342 = vld [vmem:[%s4 + $0x28] sm:$0xf]
    %v343 = vld [vmem:[%s4 + $0x2c] sm:$0xf]
    %v344 = vld [vmem:[%s4 + $0x30] sm:$0xf]
    %v345 = vld [vmem:[%s4 + $0x34] sm:$0xf]
    %v346 = vld [vmem:[%s4 + $0x38] sm:$0xf]
    %v347 = vld [vmem:[%s4 + $0x3c] sm:$0xf]
    %v348 = vlaneseq
    %v349 = vshrl.u32 %v348, 7
    %v350 = vsub.s32 0, %v349
    %v351 = vrot.slane %v55, %v350
    %v368 = vunpack.c.l.b16 %v332
    %v369 = vunpack.c.l.b16 %v333
    %v370 = vunpack.c.l.b16 %v334
    %v371 = vunpack.c.l.b16 %v335
    %v372 = vunpack.c.l.b16 %v336
    %v373 = vunpack.c.l.b16 %v337
    %v374 = vunpack.c.l.b16 %v338
    %v375 = vunpack.c.l.b16 %v339
    %v376 = vunpack.c.l.b16 %v340
    %v377 = vunpack.c.l.b16 %v341
    %v378 = vunpack.c.l.b16 %v342
    %v379 = vunpack.c.l.b16 %v343
    %v380 = vunpack.c.l.b16 %v344
    %v381 = vunpack.c.l.b16 %v345
    %v382 = vunpack.c.l.b16 %v346
    %v383 = vunpack.c.l.b16 %v347
    %v384 = vpack.c.b16 %v369, %v368
    %v385 = vpack.c.b16 %v371, %v370
    %v386 = vpack.c.b16 %v373, %v372
    %v387 = vpack.c.b16 %v375, %v374
    %v388 = vpack.c.b16 %v377, %v376
    %v389 = vpack.c.b16 %v379, %v378
    %v390 = vpack.c.b16 %v381, %v380
    %v391 = vpack.c.b16 %v383, %v382
    %400 = vmatprep.subr.bf16.mxu0 0
    %401 = vmatpush1.bf16.msra.mxu0 %v384
    %402 = vmatprep.subr.bf16.mxu0 0
    %403 = vmatpush1.bf16.msra.mxu0 %v385
    %404 = vmatprep.subr.bf16.mxu0 0
    %405 = vmatpush1.bf16.msra.mxu0 %v386
    %406 = vmatprep.subr.bf16.mxu0 0
    %407 = vmatpush1.bf16.msra.mxu0 %v387
    %408 = vmatprep.subr.bf16.mxu0 0
    %409 = vmatpush1.bf16.msra.mxu0 %v388
    %410 = vmatprep.subr.bf16.mxu0 0
    %411 = vmatpush1.bf16.msra.mxu0 %v389
    %412 = vmatprep.subr.bf16.mxu0 0
    %413 = vmatpush1.bf16.msra.mxu0 %v390
    %414 = vmatprep.subr.bf16.mxu0 0
    %415 = vmatpush1.bf16.msra.mxu0 %v391
    %416 = vmatprep.subr.bf16.mxu0 0
    %417 = vmatpush1.bf16.msra.mxu0 0
    %418 = vmatprep.subr.bf16.mxu0 0
    %419 = vmatpush1.bf16.msra.mxu0 0
    %420 = vmatprep.subr.bf16.mxu0 0
    %421 = vmatpush1.bf16.msra.mxu0 0
    %422 = vmatprep.subr.bf16.mxu0 0
    %423 = vmatpush1.bf16.msra.mxu0 0
    %424 = vmatprep.subr.bf16.mxu0 0
    %425 = vmatpush1.bf16.msra.mxu0 0
    %426 = vmatprep.subr.bf16.mxu0 0
    %427 = vmatpush1.bf16.msra.mxu0 0
    %428 = vmatprep.subr.bf16.mxu0 0
    %429 = vmatpush1.bf16.msra.mxu0 0
    %430 = vmatprep.subr.bf16.mxu0 0
    %431 = vmatpush1.bf16.msra.mxu0 0
    %432 = vmatprep.mubr.bf16.mxu0 0
    %433 = vmatmul.mubr.bf16.gmra.mrb[0].mxu0 %v331
    %v434 = vpop.f32.mrb[0].mxu0
    %v435 = vadd.f32 %v351, %v434
    %v436 = vpop.f32.mrb[0].mxu0
    %v437 = vpop.f32.mrb[0].mxu0
    %v438 = vpop.f32.mrb[0].mxu0
    %439 = vdwg.mxu0
    %v440 = vmax.f32 %v435, 0.0
    %v441 = vlaneseq
    %v442 = vshrl.u32 %v441, 7
    %v443 = vsub.s32 0, %v442
    %v444 = vrot.slane %v56, %v443
    %v445 = vmul.f32 %v440, %v444
    %vm446 = vcmask 261120
    %v447 = vsel %vm446, %v445, 0.0
    %448 = vadd.xlane.f32.xlu0 %v447
    %v449 = vpop.xlane.xlu0 %448
    %v450 = vlaneseq
    %v451 = vshrl.u32 %v450, 7
    %v452 = vsub.s32 0, %v451
    %v453 = vrot.slane %v57, %v452
    %v454 = vadd.f32 %v449, %v453
    %vm455 = vcmask 7168
    %456 = vst.msk [vmem:[%s6] sm:$0xff] %vm455, %v454
    // Predicated region
    $region34: #{tpu_custom_call.1} parent=1 // pred_check
      _
    $region35: #{tpu_custom_call.1} parent=1 // pred_check_branch
      %458 = sbr.rel (0) target = $region37
    $region36: #{tpu_custom_call.1} parent=1 // pred_region
      _
    $region37: #{tpu_custom_call.1} parent=1 // pred_fallthru
      _
    // Predicated region
    $region38: #{tpu_custom_call.1} parent=1 // pred_check
      _
    $region39: #{tpu_custom_call.1} parent=1 // pred_check_branch
      %460 = sbr.rel (0) target = $region41
    $region40: #{tpu_custom_call.1} parent=1 // pred_region
      _
    $region41: #{tpu_custom_call.1} parent=1 // pred_fallthru
      _
    %461 = vsyncpa [#allocation3], 1
    %462 = vsyncpa [#allocation5], 1

</llo_original>
